<compile_context>
chip_gen: v6e
topology: v6e:2x2x1
jax: 0.10.0
libtpu: 0.0.40
codegen_flags: <defaults>
</compile_context>

<pallas_src>
import jax
import jax.numpy as jnp
from jax import lax
from jax.experimental import pallas as pl
from jax.experimental.pallas import tpu as pltpu

_LANES = 128


def _make_losses_refiner_kernel(n_points: int, n_chunks: int):
    """Build the per-batch loss kernel for a static point count.

    params_ref : SMEM (B, 32) f32 (scalar prefetch)
        [0:9]   R_comb (row-major) = rot_cur @ delta_rot_pred
        [9:12]  T_comb             = delta_trans_pred @ rot_cur^T + trans_cur
        [12:21] R_gt   (row-major)
        [21:24] T_gt
        [24]    sym flag
    pts_ref : VMEM (1, 3, n_chunks, 128) f32 -- coords major, points densely
              packed on (sublane, lane); padded points duplicate a real point.
    out_ref : VMEM (1, 1, 128) f32 -- per-batch mean loss broadcast on lanes.
    """
    n_pad = n_chunks * _LANES
    tail = n_points - (n_chunks - 1) * _LANES   # valid lanes in the last chunk
    inv_n = 1.0 / float(n_points)
    has_pad = (n_pad != n_points)

    def kernel(params_ref, pts_ref, out_ref):
        b = pl.program_id(0)

        def prm(k):
            return params_ref[b, k]

        x = pts_ref[0, 0]            # (n_chunks, 128) dense
        y = pts_ref[0, 1]
        z = pts_ref[0, 2]

        # refined = R_comb @ p + T_comb ; gt = R_gt @ p + T_gt  (pure VPU FMAs).
        rx = prm(0) * x + prm(1) * y + prm(2) * z + prm(9)
        ry = prm(3) * x + prm(4) * y + prm(5) * z + prm(10)
        rz = prm(6) * x + prm(7) * y + prm(8) * z + prm(11)
        gx = prm(12) * x + prm(13) * y + prm(14) * z + prm(21)
        gy = prm(15) * x + prm(16) * y + prm(17) * z + prm(22)
        gz = prm(18) * x + prm(19) * y + prm(20) * z + prm(23)

        sym = prm(24)

        # ---------------- L2 term: per-point distance -> per-batch mean -------
        dx, dy, dz = rx - gx, ry - gy, rz - gz
        d = jnp.sqrt(dx * dx + dy * dy + dz * dz)           # (n_chunks, 128)
        if has_pad:
            lane_idx = lax.broadcasted_iota(jnp.int32, (1, _LANES), 1)
            tail_lane_mask = lane_idx < tail                 # (1, 128)
            l2_sum = jnp.sum(jnp.where(tail_lane_mask,
                                       d[n_chunks - 1:n_chunks], 0.0))
            if n_chunks > 1:
                l2_sum = l2_sum + jnp.sum(d[:n_chunks - 1])
        else:
            l2_sum = jnp.sum(d)
        l2_mean = l2_sum * inv_n

        @pl.when(sym == 0.0)
        def _():
            # sym assumed in {0,1}: exact-zero gate only skips the O(N^2) work.
            out_ref[...] = jnp.full((1, 1, _LANES), l2_mean, dtype=jnp.float32)

        @pl.when(sym != 0.0)
        def _():
            # -------- Chamfer term, tiled into (128,128) squared-dist blocks --
            # Shared-centroid centering keeps magnitudes small so the
            # |r|^2 + |g|^2 - 2 r.g expansion stays well conditioned.
            cx, cy, cz = jnp.mean(gx), jnp.mean(gy), jnp.mean(gz)
            rxc, ryc, rzc = rx - cx, ry - cy, rz - cz
            gxc, gyc, gzc = gx - cx, gy - cy, gz - cz
            sq_r = rxc * rxc + ryc * ryc + rzc * rzc         # (n_chunks, 128)
            sq_g = gxc * gxc + gyc * gyc + gzc * gzc
            ones_row = jnp.ones((1, _LANES), jnp.float32)

            # Norm terms folded into the matmul (K=5); contraction over the
            # sublane/coord axis of both operands (no explicit (N,3) transpose).
            def a_chunk(i):                                   # refined chunk i
                return jnp.concatenate(
                    [rxc[i:i + 1], ryc[i:i + 1], rzc[i:i + 1],
                     sq_r[i:i + 1], ones_row], axis=0)        # (5, 128)

            def b_chunk(j):                                   # gt chunk j
                return jnp.concatenate(
                    [-2.0 * gxc[j:j + 1], -2.0 * gyc[j:j + 1],
                     -2.0 * gzc[j:j + 1], ones_row, sq_g[j:j + 1]], axis=0)

            b_chunks = [b_chunk(j) for j in range(n_chunks)]

            if has_pad:
                lane_idx = lax.broadcasted_iota(jnp.int32, (1, _LANES), 1)
                tail_lane_mask = lane_idx < tail              # (1, 128)
                row_idx = lax.broadcasted_iota(jnp.int32, (_LANES, 1), 0)
                tail_row_mask = row_idx < tail                # (128, 1)

            dn = (((0,), (0,)), ((), ()))
            sum_r = 0.0                      # sum over refined pts of min_g dist
            col_min = [None] * n_chunks      # running per-gt-column min (sq)
            for i in range(n_chunks):
                a_i = a_chunk(i)
                row_run = None               # running elementwise min, (128,128)
                for j in range(n_chunks):
                    blk = lax.dot_general(a_i, b_chunks[j], dimension_numbers=dn,
                                          preferred_element_type=jnp.float32)
                    blk = jnp.maximum(blk, 0.0)               # squared distances
                    row_run = blk if row_run is None else jnp.minimum(row_run, blk)
                    cmin = jnp.min(blk, axis=0, keepdims=True)   # (1, 128)
                    col_min[j] = cmin if i == 0 else jnp.minimum(col_min[j], cmin)
                # sqrt AFTER the min: 128 sqrts per refined chunk, not 128*N.
                rmin = jnp.sqrt(jnp.min(row_run, axis=1, keepdims=True))  # (128,1)
                if has_pad and i == n_chunks - 1:
                    rmin = jnp.where(tail_row_mask, rmin, 0.0)
                sum_r = sum_r + jnp.sum(rmin)

            sum_g = 0.0                      # sum over gt pts of min_r dist
            for j in range(n_chunks):
                cmin = jnp.sqrt(col_min[j])                   # (1, 128)
                if has_pad and j == n_chunks - 1:
                    cmin = jnp.where(tail_lane_mask, cmin, 0.0)
                sum_g = sum_g + jnp.sum(cmin)

            cd_mean = 0.5 * (sum_r + sum_g) * inv_n
            loss_b = (1.0 - sym) * l2_mean + sym * cd_mean
            out_ref[...] = jnp.full((1, 1, _LANES), loss_b, dtype=jnp.float32)

    return kernel


def losses_refiner_forward(loss_inp_pred_refiner, trans_cur, rot_cur, points_tmp,
                           sym_flag, loss_inp_gt):
    f32 = jnp.float32
    dR = loss_inp_pred_refiner['rot_pred'].astype(f32)       # (B, 3, 3)
    dT = loss_inp_pred_refiner['trans_pred'].astype(f32)     # (B, 3)
    Rg = loss_inp_gt['rot_gt'].astype(f32)                   # (B, 3, 3) (.cuda() no-op)
    Tg = loss_inp_gt['trans_gt'].astype(f32)                 # (B, 3)
    Rc = rot_cur.astype(f32)                                 # (B, 3, 3)
    Tc = trans_cur.astype(f32)                               # (B, 3)
    sym = sym_flag.astype(f32)                               # (B,)

    B, N, _ = points_tmp.shape

    # Pre-compose: refined = pts @ (Rc @ dR)^T + (dT @ Rc^T + Tc)
    R_comb = jnp.einsum('bij,bjk->bik', Rc, dR)              # (B, 3, 3)
    T_comb = jnp.einsum('bk,bjk->bj', dT, Rc) + Tc           # (B, 3)

    # One SMEM-resident scalar-prefetch array with all per-batch small params.
    params = jnp.concatenate([
        R_comb.reshape(B, 9), T_comb.reshape(B, 3),
        Rg.reshape(B, 9), Tg.reshape(B, 3),
        sym.reshape(B, 1), jnp.zeros((B, 7), f32)], axis=1)  # (B, 32)

    # Dense point layout (B, 3, n_chunks, 128): free host-side reshape of the
    # (B, 3, N) row-major layout.  Padding (if any) duplicates the last point.
    n_chunks = -(-N // _LANES)
    n_pad = n_chunks * _LANES
    pts_t = jnp.transpose(points_tmp.astype(f32), (0, 2, 1))            # (B, 3, N)
    if n_pad != N:
        pts_t = jnp.pad(pts_t, ((0, 0), (0, 0), (0, n_pad - N)), mode='edge')
    pts_dense = pts_t.reshape(B, 3, n_chunks, _LANES)

    kernel = _make_losses_refiner_kernel(N, n_chunks)

    per_batch = pl.pallas_call(
        kernel,
        out_shape=jax.ShapeDtypeStruct((B, 1, _LANES), jnp.float32),
        grid_spec=pltpu.PrefetchScalarGridSpec(
            num_scalar_prefetch=1,
            grid=(B,),
            in_specs=[pl.BlockSpec((1, 3, n_chunks, _LANES),
                                   lambda b, prm: (b, 0, 0, 0))],
            out_specs=pl.BlockSpec((1, 1, _LANES), lambda b, prm: (b, 0, 0)),
        ),
        compiler_params=pltpu.CompilerParams(
            dimension_semantics=("parallel",),
            vmem_limit_bytes=32 * 1024 * 1024),
    )(params, pts_dense)

    # .mean(dim=1) is done in-kernel; mean over batch here.
    loss_pose = per_batch[:, 0, 0].mean()
    return {'loss_pose': loss_pose, 'loss_all': loss_pose}


def _reference_forward(loss_inp_pred_refiner, trans_cur, rot_cur, points_tmp,
                       sym_flag, loss_inp_gt):
    """Pure-JAX reference mirroring the PyTorch module."""
    dR = loss_inp_pred_refiner['rot_pred']
    dT = loss_inp_pred_refiner['trans_pred']
    Rg = loss_inp_gt['rot_gt']
    Tg = loss_inp_gt['trans_gt']
    pred = jnp.einsum('bnk,bjk->bnj', points_tmp, dR) + dT[:, None, :]
    gt = jnp.einsum('bnk,bjk->bnj', points_tmp, Rg) + Tg[:, None, :]
    refined = jnp.einsum('bnk,bjk->bnj', pred, rot_cur) + trans_cur[:, None, :]
    l2 = jnp.linalg.norm(refined - gt, axis=2)                     # (B, N)
    dis = jnp.linalg.norm(refined[:, :, None, :] - gt[:, None, :, :], axis=3)
    cd = 0.5 * (jnp.min(dis, axis=2) + jnp.min(dis, axis=1))       # (B, N)
    loss = ((1 - sym_flag)[:, None] * l2 + sym_flag[:, None] * cd).mean(axis=1).mean()
    return loss


if __name__ == "__main__":
    B, N = 2, 128
    key = jax.random.PRNGKey(0)
    ks = jax.random.split(key, 8)

    points_tmp = jax.random.normal(ks[0], (B, N, 3), dtype=jnp.float32)
    delta_rot_pred = jax.random.normal(ks[1], (B, 3, 3), dtype=jnp.float32) * 0.3 \
        + jnp.eye(3, dtype=jnp.float32)[None]
    delta_trans_pred = jax.random.normal(ks[2], (B, 3), dtype=jnp.float32) * 0.1
    rot_cur = jax.random.normal(ks[3], (B, 3, 3), dtype=jnp.float32) * 0.3 \
        + jnp.eye(3, dtype=jnp.float32)[None]
    trans_cur = jax.random.normal(ks[4], (B, 3), dtype=jnp.float32) * 0.1
    rot_gt = jax.random.normal(ks[5], (B, 3, 3), dtype=jnp.float32) * 0.3 \
        + jnp.eye(3, dtype=jnp.float32)[None]
    trans_gt = jax.random.normal(ks[6], (B, 3), dtype=jnp.float32) * 0.1
    sym_flag = jnp.array([0.0, 1.0], dtype=jnp.float32)            # one asym, one sym

    loss_inp_pred_refiner = {'rot_pred': delta_rot_pred, 'trans_pred': delta_trans_pred}
    loss_inp_gt = {'rot_gt': rot_gt, 'trans_gt': trans_gt}

    losses = losses_refiner_forward(loss_inp_pred_refiner, trans_cur, rot_cur,
                                    points_tmp, sym_flag, loss_inp_gt)
    jax.block_until_ready(losses['loss_all'])

    ref = _reference_forward(loss_inp_pred_refiner, trans_cur, rot_cur,
                             points_tmp, sym_flag, loss_inp_gt)
    assert jnp.allclose(losses['loss_pose'], ref, rtol=1e-4, atol=1e-4), \
        (losses['loss_pose'], ref)

    # TODO(synk): get_cano_label / knn is a staticmethod not used in forward; not implemented.
    print("KERNEL_OK")
</pallas_src>

<mosaic_0001>
module attributes {stable_mosaic.version = 11 : i64} {
  func.func @kernel(%arg0: i32, %arg1: memref<2x32xf32, #tpu.memory_space<smem>>, %arg2: memref<1x3x1x128xf32, #tpu.memory_space<vmem>>, %arg3: memref<1x1x128xf32, #tpu.memory_space<vmem>>) attributes {dimension_semantics = [#tpu.dimension_semantics<parallel>], iteration_bounds = array<i64: 2>, scalar_prefetch = 1 : i64, scratch_operands = 0 : i64, tpu.core_type = #tpu.core_type<tc>, window_params = [{transform_indices = @transform_0, window_bounds = array<i64: 1, 3, 1, 128>}, {transform_indices = @transform_1, window_bounds = array<i64: 1, 1, 128>}]} {
    %c0 = arith.constant 0 : index
    %c0_0 = arith.constant 0 : index
    %c0_1 = arith.constant 0 : index
    %c0_2 = arith.constant 0 : index
    %0 = vector.load %arg2[%c0, %c0_0, %c0_1, %c0_2] : memref<1x3x1x128xf32, #tpu.memory_space<vmem>>, vector<1x1x1x128xf32>
    %1 = vector.shape_cast %0 : vector<1x1x1x128xf32> to vector<1x128xf32>
    %c0_3 = arith.constant 0 : index
    %c1 = arith.constant 1 : index
    %c0_4 = arith.constant 0 : index
    %c0_5 = arith.constant 0 : index
    %2 = vector.load %arg2[%c0_3, %c1, %c0_4, %c0_5] : memref<1x3x1x128xf32, #tpu.memory_space<vmem>>, vector<1x1x1x128xf32>
    %3 = vector.shape_cast %2 : vector<1x1x1x128xf32> to vector<1x128xf32>
    %c0_6 = arith.constant 0 : index
    %c2 = arith.constant 2 : index
    %c0_7 = arith.constant 0 : index
    %c0_8 = arith.constant 0 : index
    %4 = vector.load %arg2[%c0_6, %c2, %c0_7, %c0_8] : memref<1x3x1x128xf32, #tpu.memory_space<vmem>>, vector<1x1x1x128xf32>
    %5 = vector.shape_cast %4 : vector<1x1x1x128xf32> to vector<1x128xf32>
    %6 = arith.index_cast %arg0 : i32 to index
    %c0_9 = arith.constant 0 : index
    %7 = memref.load %arg1[%6, %c0_9] : memref<2x32xf32, #tpu.memory_space<smem>>
    %8 = vector.broadcast %7 : f32 to vector<1x128xf32>
    %9 = arith.mulf %8, %1 : vector<1x128xf32>
    %10 = arith.index_cast %arg0 : i32 to index
    %c1_10 = arith.constant 1 : index
    %11 = memref.load %arg1[%10, %c1_10] : memref<2x32xf32, #tpu.memory_space<smem>>
    %12 = vector.broadcast %11 : f32 to vector<1x128xf32>
    %13 = arith.mulf %12, %3 : vector<1x128xf32>
    %14 = arith.addf %9, %13 : vector<1x128xf32>
    %15 = arith.index_cast %arg0 : i32 to index
    %c2_11 = arith.constant 2 : index
    %16 = memref.load %arg1[%15, %c2_11] : memref<2x32xf32, #tpu.memory_space<smem>>
    %17 = vector.broadcast %16 : f32 to vector<1x128xf32>
    %18 = arith.mulf %17, %5 : vector<1x128xf32>
    %19 = arith.addf %14, %18 : vector<1x128xf32>
    %20 = arith.index_cast %arg0 : i32 to index
    %c9 = arith.constant 9 : index
    %21 = memref.load %arg1[%20, %c9] : memref<2x32xf32, #tpu.memory_space<smem>>
    %22 = vector.broadcast %21 : f32 to vector<1x128xf32>
    %23 = arith.addf %19, %22 : vector<1x128xf32>
    %24 = arith.index_cast %arg0 : i32 to index
    %c3 = arith.constant 3 : index
    %25 = memref.load %arg1[%24, %c3] : memref<2x32xf32, #tpu.memory_space<smem>>
    %26 = vector.broadcast %25 : f32 to vector<1x128xf32>
    %27 = arith.mulf %26, %1 : vector<1x128xf32>
    %28 = arith.index_cast %arg0 : i32 to index
    %c4 = arith.constant 4 : index
    %29 = memref.load %arg1[%28, %c4] : memref<2x32xf32, #tpu.memory_space<smem>>
    %30 = vector.broadcast %29 : f32 to vector<1x128xf32>
    %31 = arith.mulf %30, %3 : vector<1x128xf32>
    %32 = arith.addf %27, %31 : vector<1x128xf32>
    %33 = arith.index_cast %arg0 : i32 to index
    %c5 = arith.constant 5 : index
    %34 = memref.load %arg1[%33, %c5] : memref<2x32xf32, #tpu.memory_space<smem>>
    %35 = vector.broadcast %34 : f32 to vector<1x128xf32>
    %36 = arith.mulf %35, %5 : vector<1x128xf32>
    %37 = arith.addf %32, %36 : vector<1x128xf32>
    %38 = arith.index_cast %arg0 : i32 to index
    %c10 = arith.constant 10 : index
    %39 = memref.load %arg1[%38, %c10] : memref<2x32xf32, #tpu.memory_space<smem>>
    %40 = vector.broadcast %39 : f32 to vector<1x128xf32>
    %41 = arith.addf %37, %40 : vector<1x128xf32>
    %42 = arith.index_cast %arg0 : i32 to index
    %c6 = arith.constant 6 : index
    %43 = memref.load %arg1[%42, %c6] : memref<2x32xf32, #tpu.memory_space<smem>>
    %44 = vector.broadcast %43 : f32 to vector<1x128xf32>
    %45 = arith.mulf %44, %1 : vector<1x128xf32>
    %46 = arith.index_cast %arg0 : i32 to index
    %c7 = arith.constant 7 : index
    %47 = memref.load %arg1[%46, %c7] : memref<2x32xf32, #tpu.memory_space<smem>>
    %48 = vector.broadcast %47 : f32 to vector<1x128xf32>
    %49 = arith.mulf %48, %3 : vector<1x128xf32>
    %50 = arith.addf %45, %49 : vector<1x128xf32>
    %51 = arith.index_cast %arg0 : i32 to index
    %c8 = arith.constant 8 : index
    %52 = memref.load %arg1[%51, %c8] : memref<2x32xf32, #tpu.memory_space<smem>>
    %53 = vector.broadcast %52 : f32 to vector<1x128xf32>
    %54 = arith.mulf %53, %5 : vector<1x128xf32>
    %55 = arith.addf %50, %54 : vector<1x128xf32>
    %56 = arith.index_cast %arg0 : i32 to index
    %c11 = arith.constant 11 : index
    %57 = memref.load %arg1[%56, %c11] : memref<2x32xf32, #tpu.memory_space<smem>>
    %58 = vector.broadcast %57 : f32 to vector<1x128xf32>
    %59 = arith.addf %55, %58 : vector<1x128xf32>
    %60 = arith.index_cast %arg0 : i32 to index
    %c12 = arith.constant 12 : index
    %61 = memref.load %arg1[%60, %c12] : memref<2x32xf32, #tpu.memory_space<smem>>
    %62 = vector.broadcast %61 : f32 to vector<1x128xf32>
    %63 = arith.mulf %62, %1 : vector<1x128xf32>
    %64 = arith.index_cast %arg0 : i32 to index
    %c13 = arith.constant 13 : index
    %65 = memref.load %arg1[%64, %c13] : memref<2x32xf32, #tpu.memory_space<smem>>
    %66 = vector.broadcast %65 : f32 to vector<1x128xf32>
    %67 = arith.mulf %66, %3 : vector<1x128xf32>
    %68 = arith.addf %63, %67 : vector<1x128xf32>
    %69 = arith.index_cast %arg0 : i32 to index
    %c14 = arith.constant 14 : index
    %70 = memref.load %arg1[%69, %c14] : memref<2x32xf32, #tpu.memory_space<smem>>
    %71 = vector.broadcast %70 : f32 to vector<1x128xf32>
    %72 = arith.mulf %71, %5 : vector<1x128xf32>
    %73 = arith.addf %68, %72 : vector<1x128xf32>
    %74 = arith.index_cast %arg0 : i32 to index
    %c21 = arith.constant 21 : index
    %75 = memref.load %arg1[%74, %c21] : memref<2x32xf32, #tpu.memory_space<smem>>
    %76 = vector.broadcast %75 : f32 to vector<1x128xf32>
    %77 = arith.addf %73, %76 : vector<1x128xf32>
    %78 = arith.index_cast %arg0 : i32 to index
    %c15 = arith.constant 15 : index
    %79 = memref.load %arg1[%78, %c15] : memref<2x32xf32, #tpu.memory_space<smem>>
    %80 = vector.broadcast %79 : f32 to vector<1x128xf32>
    %81 = arith.mulf %80, %1 : vector<1x128xf32>
    %82 = arith.index_cast %arg0 : i32 to index
    %c16 = arith.constant 16 : index
    %83 = memref.load %arg1[%82, %c16] : memref<2x32xf32, #tpu.memory_space<smem>>
    %84 = vector.broadcast %83 : f32 to vector<1x128xf32>
    %85 = arith.mulf %84, %3 : vector<1x128xf32>
    %86 = arith.addf %81, %85 : vector<1x128xf32>
    %87 = arith.index_cast %arg0 : i32 to index
    %c17 = arith.constant 17 : index
    %88 = memref.load %arg1[%87, %c17] : memref<2x32xf32, #tpu.memory_space<smem>>
    %89 = vector.broadcast %88 : f32 to vector<1x128xf32>
    %90 = arith.mulf %89, %5 : vector<1x128xf32>
    %91 = arith.addf %86, %90 : vector<1x128xf32>
    %92 = arith.index_cast %arg0 : i32 to index
    %c22 = arith.constant 22 : index
    %93 = memref.load %arg1[%92, %c22] : memref<2x32xf32, #tpu.memory_space<smem>>
    %94 = vector.broadcast %93 : f32 to vector<1x128xf32>
    %95 = arith.addf %91, %94 : vector<1x128xf32>
    %96 = arith.index_cast %arg0 : i32 to index
    %c18 = arith.constant 18 : index
    %97 = memref.load %arg1[%96, %c18] : memref<2x32xf32, #tpu.memory_space<smem>>
    %98 = vector.broadcast %97 : f32 to vector<1x128xf32>
    %99 = arith.mulf %98, %1 : vector<1x128xf32>
    %100 = arith.index_cast %arg0 : i32 to index
    %c19 = arith.constant 19 : index
    %101 = memref.load %arg1[%100, %c19] : memref<2x32xf32, #tpu.memory_space<smem>>
    %102 = vector.broadcast %101 : f32 to vector<1x128xf32>
    %103 = arith.mulf %102, %3 : vector<1x128xf32>
    %104 = arith.addf %99, %103 : vector<1x128xf32>
    %105 = arith.index_cast %arg0 : i32 to index
    %c20 = arith.constant 20 : index
    %106 = memref.load %arg1[%105, %c20] : memref<2x32xf32, #tpu.memory_space<smem>>
    %107 = vector.broadcast %106 : f32 to vector<1x128xf32>
    %108 = arith.mulf %107, %5 : vector<1x128xf32>
    %109 = arith.addf %104, %108 : vector<1x128xf32>
    %110 = arith.index_cast %arg0 : i32 to index
    %c23 = arith.constant 23 : index
    %111 = memref.load %arg1[%110, %c23] : memref<2x32xf32, #tpu.memory_space<smem>>
    %112 = vector.broadcast %111 : f32 to vector<1x128xf32>
    %113 = arith.addf %109, %112 : vector<1x128xf32>
    %114 = arith.index_cast %arg0 : i32 to index
    %c24 = arith.constant 24 : index
    %115 = memref.load %arg1[%114, %c24] : memref<2x32xf32, #tpu.memory_space<smem>>
    %116 = arith.subf %23, %77 : vector<1x128xf32>
    %117 = arith.subf %41, %95 : vector<1x128xf32>
    %118 = arith.subf %59, %113 : vector<1x128xf32>
    %119 = arith.mulf %116, %116 : vector<1x128xf32>
    %120 = arith.mulf %117, %117 : vector<1x128xf32>
    %121 = arith.addf %119, %120 : vector<1x128xf32>
    %122 = arith.mulf %118, %118 : vector<1x128xf32>
    %123 = arith.addf %121, %122 : vector<1x128xf32>
    %124 = math.sqrt %123 : vector<1x128xf32>
    %125 = vector.shape_cast %124 : vector<1x128xf32> to vector<1x1x128xf32>
    %cst = arith.constant dense<0.000000e+00> : vector<1xf32>
    %126 = vector.multi_reduction <add>, %125, %cst [1, 2] : vector<1x1x128xf32> to vector<1xf32>
    %127 = vector.shape_cast %126 : vector<1xf32> to vector<1x1x1xf32>
    %128 = vector.extract %127[0, 0, 0] : f32 from vector<1x1x1xf32>
    %cst_12 = arith.constant 7.812500e-03 : f32
    %129 = arith.mulf %128, %cst_12 : f32
    %cst_13 = arith.constant 0.000000e+00 : f32
    %130 = arith.cmpf oeq, %115, %cst_13 : f32
    %131 = arith.extui %130 : i1 to i32
    %c0_i32 = arith.constant 0 : i32
    %132 = arith.cmpi ne, %131, %c0_i32 : i32
    scf.if %132 {
      %136 = vector.broadcast %129 : f32 to vector<1x1x128xf32>
      %c0_16 = arith.constant 0 : index
      %c0_17 = arith.constant 0 : index
      %c0_18 = arith.constant 0 : index
      %137 = vector.load %arg3[%c0_16, %c0_17, %c0_18] : memref<1x1x128xf32, #tpu.memory_space<vmem>>, vector<1x1x128xf32>
      tpu.vector_store %arg3[%c0_16, %c0_17, %c0_18], %136 {strides = array<i32>} : memref<1x1x128xf32, #tpu.memory_space<vmem>>, vector<1x1x128xf32>,
    } else {
    }
    %cst_14 = arith.constant 0.000000e+00 : f32
    %133 = arith.cmpf one, %115, %cst_14 : f32
    %134 = arith.extui %133 : i1 to i32
    %c0_i32_15 = arith.constant 0 : i32
    %135 = arith.cmpi ne, %134, %c0_i32_15 : i32
    scf.if %135 {
      %136 = vector.shape_cast %77 : vector<1x128xf32> to vector<1x1x128xf32>
      %cst_16 = arith.constant dense<0.000000e+00> : vector<1xf32>
      %137 = vector.multi_reduction <add>, %136, %cst_16 [1, 2] : vector<1x1x128xf32> to vector<1xf32>
      %138 = vector.shape_cast %137 : vector<1xf32> to vector<1x1x1xf32>
      %139 = vector.extract %138[0, 0, 0] : f32 from vector<1x1x1xf32>
      %cst_17 = arith.constant 1.280000e+02 : f32
      %140 = arith.divf %139, %cst_17 : f32
      %141 = vector.shape_cast %95 : vector<1x128xf32> to vector<1x1x128xf32>
      %cst_18 = arith.constant dense<0.000000e+00> : vector<1xf32>
      %142 = vector.multi_reduction <add>, %141, %cst_18 [1, 2] : vector<1x1x128xf32> to vector<1xf32>
      %143 = vector.shape_cast %142 : vector<1xf32> to vector<1x1x1xf32>
      %144 = vector.extract %143[0, 0, 0] : f32 from vector<1x1x1xf32>
      %cst_19 = arith.constant 1.280000e+02 : f32
      %145 = arith.divf %144, %cst_19 : f32
      %146 = vector.shape_cast %113 : vector<1x128xf32> to vector<1x1x128xf32>
      %cst_20 = arith.constant dense<0.000000e+00> : vector<1xf32>
      %147 = vector.multi_reduction <add>, %146, %cst_20 [1, 2] : vector<1x1x128xf32> to vector<1xf32>
      %148 = vector.shape_cast %147 : vector<1xf32> to vector<1x1x1xf32>
      %149 = vector.extract %148[0, 0, 0] : f32 from vector<1x1x1xf32>
      %cst_21 = arith.constant 1.280000e+02 : f32
      %150 = arith.divf %149, %cst_21 : f32
      %151 = vector.broadcast %140 : f32 to vector<1x128xf32>
      %152 = arith.subf %23, %151 : vector<1x128xf32>
      %153 = vector.broadcast %145 : f32 to vector<1x128xf32>
      %154 = arith.subf %41, %153 : vector<1x128xf32>
      %155 = vector.broadcast %150 : f32 to vector<1x128xf32>
      %156 = arith.subf %59, %155 : vector<1x128xf32>
      %157 = vector.broadcast %140 : f32 to vector<1x128xf32>
      %158 = arith.subf %77, %157 : vector<1x128xf32>
      %159 = vector.broadcast %145 : f32 to vector<1x128xf32>
      %160 = arith.subf %95, %159 : vector<1x128xf32>
      %161 = vector.broadcast %150 : f32 to vector<1x128xf32>
      %162 = arith.subf %113, %161 : vector<1x128xf32>
      %163 = arith.mulf %152, %152 : vector<1x128xf32>
      %164 = arith.mulf %154, %154 : vector<1x128xf32>
      %165 = arith.addf %163, %164 : vector<1x128xf32>
      %166 = arith.mulf %156, %156 : vector<1x128xf32>
      %167 = arith.addf %165, %166 : vector<1x128xf32>
      %168 = arith.mulf %158, %158 : vector<1x128xf32>
      %169 = arith.mulf %160, %160 : vector<1x128xf32>
      %170 = arith.addf %168, %169 : vector<1x128xf32>
      %171 = arith.mulf %162, %162 : vector<1x128xf32>
      %172 = arith.addf %170, %171 : vector<1x128xf32>
      %cst_22 = arith.constant 1.000000e+00 : f32
      %173 = vector.broadcast %cst_22 : f32 to vector<1x128xf32>
      %cst_23 = arith.constant -2.000000e+00 : f32
      %174 = vector.broadcast %cst_23 : f32 to vector<1x128xf32>
      %175 = arith.mulf %174, %158 : vector<1x128xf32>
      %cst_24 = arith.constant -2.000000e+00 : f32
      %176 = vector.broadcast %cst_24 : f32 to vector<1x128xf32>
      %177 = arith.mulf %176, %160 : vector<1x128xf32>
      %cst_25 = arith.constant -2.000000e+00 : f32
      %178 = vector.broadcast %cst_25 : f32 to vector<1x128xf32>
      %179 = arith.mulf %178, %162 : vector<1x128xf32>
      %180 = tpu.concatenate %175, %177, %179, %173, %172 in 0 : vector<1x128xf32>, vector<1x128xf32>, vector<1x128xf32>, vector<1x128xf32>, vector<1x128xf32> -> vector<5x128xf32>
      %181 = tpu.concatenate %152, %154, %156, %167, %173 in 0 : vector<1x128xf32>, vector<1x128xf32>, vector<1x128xf32>, vector<1x128xf32>, vector<1x128xf32> -> vector<5x128xf32>
      %cst_26 = arith.constant dense<0.000000e+00> : vector<128x128xf32>
      %182 = tpu.matmul %181, %180, %cst_26 {dimension_numbers = #tpu.dot_dimension_numbers<[0], [0], [1], [1], [0, 1, 1, 1], [], []>} : vector<5x128xf32>, vector<5x128xf32>, vector<128x128xf32> -> vector<128x128xf32>
      %cst_27 = arith.constant 0.000000e+00 : f32
      %183 = vector.broadcast %cst_27 : f32 to vector<128x128xf32>
      %184 = arith.maximumf %182, %183 : vector<128x128xf32>
      %cst_28 = arith.constant dense<0x7F800000> : vector<128xf32>
      %185 = vector.multi_reduction <minimumf>, %184, %cst_28 [0] : vector<128x128xf32> to vector<128xf32>
      %186 = vector.shape_cast %185 : vector<128xf32> to vector<1x128xf32>
      %cst_29 = arith.constant dense<0x7F800000> : vector<128xf32>
      %187 = vector.multi_reduction <minimumf>, %184, %cst_29 [1] : vector<128x128xf32> to vector<128xf32>
      %188 = vector.shape_cast %187 : vector<128xf32> to vector<128x1xf32>
      %189 = math.sqrt %188 : vector<128x1xf32>
      %190 = vector.shape_cast %189 : vector<128x1xf32> to vector<1x128x1xf32>
      %cst_30 = arith.constant dense<0.000000e+00> : vector<1xf32>
      %191 = vector.multi_reduction <add>, %190, %cst_30 [1, 2] : vector<1x128x1xf32> to vector<1xf32>
      %192 = vector.shape_cast %191 : vector<1xf32> to vector<1x1x1xf32>
      %193 = vector.extract %192[0, 0, 0] : f32 from vector<1x1x1xf32>
      %cst_31 = arith.constant 0.000000e+00 : f32
      %194 = arith.addf %cst_31, %193 : f32
      %195 = math.sqrt %186 : vector<1x128xf32>
      %196 = vector.shape_cast %195 : vector<1x128xf32> to vector<1x1x128xf32>
      %cst_32 = arith.constant dense<0.000000e+00> : vector<1xf32>
      %197 = vector.multi_reduction <add>, %196, %cst_32 [1, 2] : vector<1x1x128xf32> to vector<1xf32>
      %198 = vector.shape_cast %197 : vector<1xf32> to vector<1x1x1xf32>
      %199 = vector.extract %198[0, 0, 0] : f32 from vector<1x1x1xf32>
      %cst_33 = arith.constant 0.000000e+00 : f32
      %200 = arith.addf %cst_33, %199 : f32
      %201 = arith.addf %194, %200 : f32
      %cst_34 = arith.constant 5.000000e-01 : f32
      %202 = arith.mulf %cst_34, %201 : f32
      %cst_35 = arith.constant 7.812500e-03 : f32
      %203 = arith.mulf %202, %cst_35 : f32
      %cst_36 = arith.constant 1.000000e+00 : f32
      %204 = arith.subf %cst_36, %115 : f32
      %205 = arith.mulf %204, %129 : f32
      %206 = arith.mulf %115, %203 : f32
      %207 = arith.addf %205, %206 : f32
      %208 = vector.broadcast %207 : f32 to vector<1x1x128xf32>
      %c0_37 = arith.constant 0 : index
      %c0_38 = arith.constant 0 : index
      %c0_39 = arith.constant 0 : index
      %209 = vector.load %arg3[%c0_37, %c0_38, %c0_39] : memref<1x1x128xf32, #tpu.memory_space<vmem>>, vector<1x1x128xf32>
      tpu.vector_store %arg3[%c0_37, %c0_38, %c0_39], %208 {strides = array<i32>} : memref<1x1x128xf32, #tpu.memory_space<vmem>>, vector<1x1x128xf32>,
    } else {
    }
    return
  }
  func.func @transform_0(%arg0: i32, %arg1: memref<2x32xf32, #tpu.memory_space<smem>>) -> (i32, i32, i32, i32) {
    %c0_i32 = arith.constant 0 : i32
    %c0_i32_0 = arith.constant 0 : i32
    %c0_i32_1 = arith.constant 0 : i32
    %c0_i32_2 = arith.constant 0 : i32
    return %arg0, %c0_i32, %c0_i32_0, %c0_i32_1 : i32, i32, i32, i32
  }
  func.func @transform_1(%arg0: i32, %arg1: memref<2x32xf32, #tpu.memory_space<smem>>) -> (i32, i32, i32) {
    %c0_i32 = arith.constant 0 : i32
    %c0_i32_0 = arith.constant 0 : i32
    %c0_i32_1 = arith.constant 0 : i32
    return %arg0, %c0_i32, %c0_i32_0 : i32, i32, i32
  }
}

</mosaic_0001>

<llo_original>
// kernel: tpu_custom_call.1
$region0: #{tpu_custom_call.1}
  #allocation0 [shape = 'u32[]', space=smem, size = 0x4, offset = 0x4, fixed_abs, tag = 'smem constant byte address 0x4 - core index']
  #allocation1 [shape = 'u32[144,128]{1,0:T(1,128)}', space=vmem, size = 0x12000, scoped, tag = 'internal scratch']
  #allocation2 [shape = 's32[1]{0}', space=sflag, size = 0x4, scoped, tag = 'scoped memory for tpu_custom_call.1']
  #allocation3 [shape = 'u8[1024]{0}', space=smem, size = 0x400, scoped, tag = 'prefetched SMEM operand 0']
  %s0 = inlined_call_operand.hbm [shape: f32[2,32], index: 0, kind: input, shape index: {}]
  %s1 = inlined_call_operand.hbm [shape: f32[2,3,1,128], index: 1, kind: input, shape index: {}]
  %s2 = inlined_call_operand.hbm [shape: f32[2,1,128], index: 2, kind: output, shape index: {}]
  %s3 = sld [smem:[#allocation0]]
  $region49: #{tpu_custom_call.1} parent=0
    _
  %s5 = ssub.s32 1, %s3
  %s6 = scalar_select 0, %s5, %s3
  %8 = dma.hbm_to_smem %s0, 32, [#allocation3], [#allocation2]
  %9 = dma.done [#allocation2], 32
  %10 = sfence
  $region1: #{tpu_custom_call.1} parent=0
    #allocation4 [shape = 'u8[3072]{0}', space=vmem, size = 0xc00, scoped, tag = 'input window, operand 1']
    #allocation5 [shape = 's32[2]{0}', space=sflag, size = 0x8, scoped, tag = 'scoped memory for tpu_custom_call.1']
    #allocation6 [shape = 's32[2]{0}', space=sflag, size = 0x8, scoped, tag = 'scoped memory for tpu_custom_call.1']
    #allocation7 [shape = 'u8[1024]{0}', space=vmem, size = 0x400, scoped, tag = 'output window, operand 0']
    %11 = vsyncpa [#allocation5], 0
    %s12 = scalar_lea.sflag [#allocation5], 1
    %13 = vsyncpa %s12, 0
    %14 = vsyncpa [#allocation6], 0
    %s15 = scalar_lea.sflag [#allocation6], 1
    %16 = vsyncpa %s15, 0
    loop: start=0, step=1, limit=4
    $region2: #{tpu_custom_call.1} parent=1 // loop_pre_header
      _
    $region3: #{tpu_custom_call.1} parent=1 // loop_header
      %s18 = sphi 0, %s22
      %p19 = scmp.ge.s32.totalorder %s18, 4
      %s28 = sphi 0, %s30
      %s31 = sphi 0, %s28
      %s32 = sphi 0, %s31
      %s48 = sphi 0, %s32
      %s54 = sphi 0, %s56
      %s57 = sphi 0, %s54
      %s58 = sphi 0, %s57
      %s74 = sphi 0, %s58
    $region4: #{tpu_custom_call.1} parent=1 // loop_header_branch
      %21 = sbr.rel (%p19) target = $region8
    $region5: #{tpu_custom_call.1} parent=1 // loop_body
      %s23 = ssub.s32 %s18, 1
      %s24 = ssub.s32 %s18, 2
      %s25 = sadd.s32 %s18, 1
      %s26 = ssub.s32 %s18, %s25
      %p27 = scmp.eq.s32.totalorder %s26, 0
      %s29 = sadd.s32 %s28, 1
      %s30 = scalar_select %p27, %s28, %s29
      %p33 = pneg %p27
      %p34 = scmp.eq.s32.totalorder %s18, 1
      %p35 = por %p33, %p34
      %p36 = scmp.ne.s32.totalorder %s28, %s31
      %p37 = scmp.eq.s32.totalorder %s18, 0
      %p38 = por %p36, %p37
      %p39 = scmp.ne.s32.totalorder %s28, %s31
      %p40 = scmp.eq.s32.totalorder %s23, 1
      %p41 = por %p39, %p40
      %p42 = scmp.ne.s32.totalorder %s31, %s32
      %p43 = scmp.eq.s32.totalorder %s23, 0
      %p44 = por %p42, %p43
      %p45 = scmp.ne.s32.totalorder %s31, %s32
      %p46 = scmp.eq.s32.totalorder %s24, 1
      %p47 = por %p45, %p46
      %p49 = scmp.ne.s32.totalorder %s32, %s48
      %p50 = scmp.eq.s32.totalorder %s24, 0
      %p51 = por %p49, %p50
      %s52 = ssub.s32 %s18, %s25
      %p53 = scmp.eq.s32.totalorder %s52, 0
      %s55 = sadd.s32 %s54, 1
      %s56 = scalar_select %p53, %s54, %s55
      %p59 = pneg %p53
      %p60 = scmp.eq.s32.totalorder %s18, 1
      %p61 = por %p59, %p60
      %p62 = scmp.ne.s32.totalorder %s54, %s57
      %p63 = scmp.eq.s32.totalorder %s18, 0
      %p64 = por %p62, %p63
      %p65 = scmp.ne.s32.totalorder %s54, %s57
      %p66 = scmp.eq.s32.totalorder %s23, 1
      %p67 = por %p65, %p66
      %p68 = scmp.ne.s32.totalorder %s57, %s58
      %p69 = scmp.eq.s32.totalorder %s23, 0
      %p70 = por %p68, %p69
      %p71 = scmp.ne.s32.totalorder %s57, %s58
      %p72 = scmp.eq.s32.totalorder %s24, 1
      %p73 = por %p71, %p72
      %p75 = scmp.ne.s32.totalorder %s58, %s74
      %p76 = scmp.eq.s32.totalorder %s24, 0
      %p77 = por %p75, %p76
      %p78 = scmp.le.s32.totalorder 1, %s18
      %p79 = scmp.lt.s32.totalorder %s18, 3
      %p80 = pnand %p78, %p79
      %p81 = pneg %p80
      // Predicated region
      $region9: #{tpu_custom_call.1} parent=5 // pred_check
        _
      $region10: #{tpu_custom_call.1} parent=5 // pred_check_branch
        %83 = sbr.rel (%p80) target = $region12
      $region11: #{tpu_custom_call.1} parent=5 // pred_region
        %s84 = ssub.s32 %s18, 1
      $region12: #{tpu_custom_call.1} parent=5 // pred_fallthru
        _
      %p85 = scmp.lt.s32.totalorder %s18, 2
      // Predicated region
      $region13: #{tpu_custom_call.1} parent=5 // pred_check
        %p86 = pneg %p85
      $region14: #{tpu_custom_call.1} parent=5 // pred_check_branch
        %88 = sbr.rel (%p86) target = $region16
      $region15: #{tpu_custom_call.1} parent=5 // pred_region
        // Predicated region
        $region17: #{tpu_custom_call.1} parent=15 // pred_check
          %p89 = pneg %p38
        $region18: #{tpu_custom_call.1} parent=15 // pred_check_branch
          %91 = sbr.rel (%p89) target = $region20
        $region19: #{tpu_custom_call.1} parent=15 // pred_region
          %s92 = sand.u32 %s28, 1
          %s93 = scalar_lea.sflag [#allocation5], %s92
          %s94 = sand.u32 %s28, 1
          %s95 = smul.addr %s94, 3
          %s96 = scalar_lea.vmem [#allocation4], %s95
          %s98 = ssub.s32 48, 48
          %99 = vsyncadd %s93, %s98
          %s100 = smul.addr %s18, 3
          %s101 = smul.addr %s100, 16
          %s102 = scalar_lea.hbm %s1, %s101
          %s103 = sshll.u32 %s96, 4
          %s104 = int_to_ptr.vmem [resolvable:$true] %s103
          %109 = dma.hbm_to_vmem [thread:$0]  %s102, 48, %s104, %s93, 16, 16, 1
        $region20: #{tpu_custom_call.1} parent=15 // pred_fallthru
          _
      $region16: #{tpu_custom_call.1} parent=5 // pred_fallthru
        _
      %p110 = scmp.le.s32.totalorder 1, %s18
      %p111 = scmp.lt.s32.totalorder %s18, 3
      %p112 = pnand %p110, %p111
      %p113 = pneg %p112
      // Predicated region
      $region21: #{tpu_custom_call.1} parent=5 // pred_check
        _
      $region22: #{tpu_custom_call.1} parent=5 // pred_check_branch
        %115 = sbr.rel (%p112) target = $region24
      $region23: #{tpu_custom_call.1} parent=5 // pred_region
        %s116 = ssub.s32 %s18, 1
        %s117 = sand.u32 %s31, 1
        %s118 = scalar_lea.sflag [#allocation5], %s117
        %s119 = sand.u32 %s31, 1
        %s120 = smul.addr %s119, 3
        %s121 = scalar_lea.vmem [#allocation4], %s120
        // Predicated region
        $region25: #{tpu_custom_call.1} parent=23 // pred_check
          %p122 = pneg %p44
        $region26: #{tpu_custom_call.1} parent=23 // pred_check_branch
          %124 = sbr.rel (%p122) target = $region28
        $region27: #{tpu_custom_call.1} parent=23 // pred_region
          %125 = dma.done %s118, 48
        $region28: #{tpu_custom_call.1} parent=23 // pred_fallthru
          _
        %s126 = sand.u32 %s31, 1
        %s127 = scalar_lea.sflag [#allocation5], %s126
        %s128 = sand.u32 %s31, 1
        %s129 = smul.addr %s128, 3
        %s130 = scalar_lea.vmem [#allocation4], %s129
        %p131 = pneg %p44
        %p132 = pneg %p41
        %p133 = pneg %p70
        %p134 = pneg %p67
        %s135 = sand.u32 %s57, 1
        %s136 = scalar_lea.sflag [#allocation6], %s135
        %s137 = sand.u32 %s57, 1
        %s138 = scalar_lea.vmem [#allocation7], %s137
        %v139 = vld [vmem:[%s121] sm:$0x1]
        %s140 = scalar_lea.vmem %s121, 1 [#allocation4]
        %v141 = vld [vmem:[%s140] sm:$0x1]
        %s142 = scalar_lea.vmem %s121, 2 [#allocation4]
        %v143 = vld [vmem:[%s142] sm:$0x1]
        %s144 = smul.u32 %s23, 128
        %s145 = sld [smem:[#allocation3 + %s144]]
        %v146 = vstv %s145
        %v147 = vmul.f32 %v146, %v139
        %s148 = sadd.s32 %s144, 1
        %s149 = sld [smem:[#allocation3 + %s148]]
        %v150 = vstv %s149
        %v151 = vmul.f32 %v150, %v141
        %v152 = vadd.f32 %v147, %v151
        %s153 = sadd.s32 %s144, 2
        %s154 = sld [smem:[#allocation3 + %s153]]
        %v155 = vstv %s154
        %v156 = vmul.f32 %v155, %v143
        %v157 = vadd.f32 %v152, %v156
        %s158 = sadd.s32 %s144, 9
        %s159 = sld [smem:[#allocation3 + %s158]]
        %v160 = vstv %s159
        %v161 = vadd.f32 %v157, %v160
        %s162 = sadd.s32 %s144, 3
        %s163 = sld [smem:[#allocation3 + %s162]]
        %v164 = vstv %s163
        %v165 = vmul.f32 %v164, %v139
        %s166 = sadd.s32 %s144, 4
        %s167 = sld [smem:[#allocation3 + %s166]]
        %v168 = vstv %s167
        %v169 = vmul.f32 %v168, %v141
        %v170 = vadd.f32 %v165, %v169
        %s171 = sadd.s32 %s144, 5
        %s172 = sld [smem:[#allocation3 + %s171]]
        %v173 = vstv %s172
        %v174 = vmul.f32 %v173, %v143
        %v175 = vadd.f32 %v170, %v174
        %s176 = sadd.s32 %s144, 10
        %s177 = sld [smem:[#allocation3 + %s176]]
        %v178 = vstv %s177
        %v179 = vadd.f32 %v175, %v178
        %s180 = sadd.s32 %s144, 6
        %s181 = sld [smem:[#allocation3 + %s180]]
        %v182 = vstv %s181
        %v183 = vmul.f32 %v182, %v139
        %s184 = sadd.s32 %s144, 7
        %s185 = sld [smem:[#allocation3 + %s184]]
        %v186 = vstv %s185
        %v187 = vmul.f32 %v186, %v141
        %v188 = vadd.f32 %v183, %v187
        %s189 = sadd.s32 %s144, 8
        %s190 = sld [smem:[#allocation3 + %s189]]
        %v191 = vstv %s190
        %v192 = vmul.f32 %v191, %v143
        %v193 = vadd.f32 %v188, %v192
        %s194 = sadd.s32 %s144, 11
        %s195 = sld [smem:[#allocation3 + %s194]]
        %v196 = vstv %s195
        %v197 = vadd.f32 %v193, %v196
        %s198 = sadd.s32 %s144, 12
        %s199 = sld [smem:[#allocation3 + %s198]]
        %v200 = vstv %s199
        %v201 = vmul.f32 %v200, %v139
        %s202 = sadd.s32 %s144, 13
        %s203 = sld [smem:[#allocation3 + %s202]]
        %v204 = vstv %s203
        %v205 = vmul.f32 %v204, %v141
        %v206 = vadd.f32 %v201, %v205
        %s207 = sadd.s32 %s144, 14
        %s208 = sld [smem:[#allocation3 + %s207]]
        %v209 = vstv %s208
        %v210 = vmul.f32 %v209, %v143
        %v211 = vadd.f32 %v206, %v210
        %s212 = sadd.s32 %s144, 21
        %s213 = sld [smem:[#allocation3 + %s212]]
        %v214 = vstv %s213
        %v215 = vadd.f32 %v211, %v214
        %s216 = sadd.s32 %s144, 15
        %s217 = sld [smem:[#allocation3 + %s216]]
        %v218 = vstv %s217
        %v219 = vmul.f32 %v218, %v139
        %s220 = sadd.s32 %s144, 16
        %s221 = sld [smem:[#allocation3 + %s220]]
        %v222 = vstv %s221
        %v223 = vmul.f32 %v222, %v141
        %v224 = vadd.f32 %v219, %v223
        %s225 = sadd.s32 %s144, 17
        %s226 = sld [smem:[#allocation3 + %s225]]
        %v227 = vstv %s226
        %v228 = vmul.f32 %v227, %v143
        %v229 = vadd.f32 %v224, %v228
        %s230 = sadd.s32 %s144, 22
        %s231 = sld [smem:[#allocation3 + %s230]]
        %v232 = vstv %s231
        %v233 = vadd.f32 %v229, %v232
        %s234 = sadd.s32 %s144, 18
        %s235 = sld [smem:[#allocation3 + %s234]]
        %v236 = vstv %s235
        %v237 = vmul.f32 %v236, %v139
        %s238 = sadd.s32 %s144, 19
        %s239 = sld [smem:[#allocation3 + %s238]]
        %v240 = vstv %s239
        %v241 = vmul.f32 %v240, %v141
        %v242 = vadd.f32 %v237, %v241
        %s243 = sadd.s32 %s144, 20
        %s244 = sld [smem:[#allocation3 + %s243]]
        %v245 = vstv %s244
        %v246 = vmul.f32 %v245, %v143
        %v247 = vadd.f32 %v242, %v246
        %s248 = sadd.s32 %s144, 23
        %s249 = sld [smem:[#allocation3 + %s248]]
        %v250 = vstv %s249
        %v251 = vadd.f32 %v247, %v250
        %s252 = sadd.s32 %s144, 24
        %s253 = sld [smem:[#allocation3 + %s252]]
        %v254 = vsub.f32 %v161, %v215
        %v255 = vsub.f32 %v179, %v233
        %v256 = vsub.f32 %v197, %v251
        %v257 = vmul.f32 %v254, %v254
        %v258 = vmul.f32 %v255, %v255
        %v259 = vadd.f32 %v257, %v258
        %v260 = vmul.f32 %v256, %v256
        %v261 = vadd.f32 %v259, %v260
        %v262 = vrsqrt.pop %v261
        %v263 = vmul.f32 %v261, %v262
        %vm264 = vcmp.eq.f32.partialorder %v261, inf
        %v265 = vsel %vm264, %v261, %v263
        %vm266 = vcmp.eq.f32.partialorder %v261, 0.0
        %v267 = vand.u32 %v261, 2147483648
        %v268 = vsel %vm266, %v267, %v265
        %vm269 = vcmask 1040384
        %v270 = vsel %vm269, %v268, 0.0
        %271 = vadd.xlane.f32.xlu0 %v270
        %v272 = vpop.xlane.xlu0 %271
        %v273 = vrot.slane %v272, 4
        %v274 = vadd.f32 %v272, %v273
        %v275 = vrot.slane %v274, 2
        %v276 = vadd.f32 %v274, %v275
        %v277 = vrot.slane %v276, 1
        %v278 = vadd.f32 %v276, %v277
        %s279 = vtos %v278
        %s280 = smul.f32 %s279, 0.0078125
        %p281 = scmp.eq.f32.partialorder %s253, 0.0
        // Predicated region
        $region29: #{tpu_custom_call.1} parent=23 // pred_check
          %p282 = pneg %p281
        $region30: #{tpu_custom_call.1} parent=23 // pred_check_branch
          %284 = sbr.rel (%p282) target = $region32
        $region31: #{tpu_custom_call.1} parent=23 // pred_region
          %v285 = vstv %s280
          %286 = vst [vmem:[%s138] sm:$0x1] %v285
        $region32: #{tpu_custom_call.1} parent=23 // pred_fallthru
          _
        %p287 = scmp.ne.f32.partialorder %s253, 0.0
        // Predicated region
        $region33: #{tpu_custom_call.1} parent=23 // pred_check
          %p288 = pneg %p287
        $region34: #{tpu_custom_call.1} parent=23 // pred_check_branch
          %290 = sbr.rel (%p288) target = $region36
        $region35: #{tpu_custom_call.1} parent=23 // pred_region
          %v291 = vsel %vm269, %v215, 0.0
          %292 = vadd.xlane.f32.xlu0 %v291
          %v293 = vpop.xlane.xlu0 %292
          %v294 = vrot.slane %v293, 4
          %v295 = vadd.f32 %v293, %v294
          %v296 = vrot.slane %v295, 2
          %v297 = vadd.f32 %v295, %v296
          %v298 = vrot.slane %v297, 1
          %v299 = vadd.f32 %v297, %v298
          %s300 = vtos %v299
          %v301 = vrcp.pop 128.0
          %s302 = vtos %v301
          %s303 = smul.f32 %s300, %s302
          %v304 = vsel %vm269, %v233, 0.0
          %305 = vadd.xlane.f32.xlu0 %v304
          %v306 = vpop.xlane.xlu0 %305
          %v307 = vrot.slane %v306, 4
          %v308 = vadd.f32 %v306, %v307
          %v309 = vrot.slane %v308, 2
          %v310 = vadd.f32 %v308, %v309
          %v311 = vrot.slane %v310, 1
          %v312 = vadd.f32 %v310, %v311
          %s313 = vtos %v312
          %v314 = vrcp.pop 128.0
          %s315 = vtos %v314
          %s316 = smul.f32 %s313, %s315
          %v317 = vsel %vm269, %v251, 0.0
          %318 = vadd.xlane.f32.xlu0 %v317
          %v319 = vpop.xlane.xlu0 %318
          %v320 = vrot.slane %v319, 4
          %v321 = vadd.f32 %v319, %v320
          %v322 = vrot.slane %v321, 2
          %v323 = vadd.f32 %v321, %v322
          %v324 = vrot.slane %v323, 1
          %v325 = vadd.f32 %v323, %v324
          %s326 = vtos %v325
          %v327 = vrcp.pop 128.0
          %s328 = vtos %v327
          %s329 = smul.f32 %s326, %s328
          %v330 = vstv %s303
          %v331 = vsub.f32 %v161, %v330
          %v332 = vstv %s316
          %v333 = vsub.f32 %v179, %v332
          %v334 = vstv %s329
          %v335 = vsub.f32 %v197, %v334
          %v336 = vsub.f32 %v215, %v330
          %v337 = vsub.f32 %v233, %v332
          %v338 = vsub.f32 %v251, %v334
          %v339 = vmul.f32 %v331, %v331
          %v340 = vmul.f32 %v333, %v333
          %v341 = vadd.f32 %v339, %v340
          %v342 = vmul.f32 %v335, %v335
          %v343 = vadd.f32 %v341, %v342
          %v344 = vmul.f32 %v336, %v336
          %v345 = vmul.f32 %v337, %v337
          %v346 = vadd.f32 %v344, %v345
          %v347 = vmul.f32 %v338, %v338
          %v348 = vadd.f32 %v346, %v347
          %v349 = vmul.f32 %v336, -2.0
          %v350 = vmul.f32 %v337, -2.0
          %v351 = vmul.f32 %v338, -2.0
          %v353 = vlaneseq
          %v354 = vshrl.u32 %v353, 7
          %v355 = vsub.s32 0, %v354
          %v356 = vrot.slane %v350, %v355
          %v359 = vlaneseq
          %v360 = vshrl.u32 %v359, 7
          %v361 = vsub.s32 0, %v360
          %v362 = vrot.slane %v351, %v361
          %v365 = vlaneseq
          %v366 = vshrl.u32 %v365, 7
          %v367 = vsub.s32 0, %v366
          %v368 = vrot.slane %v348, %v367
          %v370 = vsel %vm269, %v349, %v356
          %vm371 = vcmask 1041408
          %v372 = vsel %vm371, %v370, %v362
          %vm373 = vcmask 1042432
          %v374 = vsel %vm373, %v372, 1.0
          %vm375 = vcmask 1043456
          %v376 = vsel %vm375, %v374, %v368
          %v378 = vlaneseq
          %v379 = vshrl.u32 %v378, 7
          %v380 = vsub.s32 0, %v379
          %v381 = vrot.slane %v333, %v380
          %v384 = vlaneseq
          %v385 = vshrl.u32 %v384, 7
          %v386 = vsub.s32 0, %v385
          %v387 = vrot.slane %v335, %v386
          %v390 = vlaneseq
          %v391 = vshrl.u32 %v390, 7
          %v392 = vsub.s32 0, %v391
          %v393 = vrot.slane %v343, %v392
          %v395 = vsel %vm269, %v331, %v381
          %v396 = vsel %vm371, %v395, %v387
          %v397 = vsel %vm373, %v396, %v393
          %v398 = vsel %vm375, %v397, 1.0
          %399 = vxpose.xlu0.b32.start [1/16] %v398, 128
          %400 = vxpose.xlu0.b32.cont [2/16] 0.0, 128
          %401 = vxpose.xlu0.b32.cont [3/16] 0.0, 128
          %402 = vxpose.xlu0.b32.cont [4/16] 0.0, 128
          %403 = vxpose.xlu0.b32.cont [5/16] 0.0, 128
          %404 = vxpose.xlu0.b32.cont [6/16] 0.0, 128
          %405 = vxpose.xlu0.b32.cont [7/16] 0.0, 128
          %406 = vxpose.xlu0.b32.cont [8/16] 0.0, 128
          %407 = vxpose.xlu0.b32.cont [9/16] 0.0, 128
          %408 = vxpose.xlu0.b32.cont [10/16] 0.0, 128
          %409 = vxpose.xlu0.b32.cont [11/16] 0.0, 128
          %410 = vxpose.xlu0.b32.cont [12/16] 0.0, 128
          %411 = vxpose.xlu0.b32.cont [13/16] 0.0, 128
          %412 = vxpose.xlu0.b32.cont [14/16] 0.0, 128
          %413 = vxpose.xlu0.b32.cont [15/16] 0.0, 128
          %414 = vxpose.xlu0.b32.end [16/16] 0.0, 128
          %v415 = vpop.trf.xlu0
          %v416 = vpop.trf.xlu0
          %v417 = vpop.trf.xlu0
          %v418 = vpop.trf.xlu0
          %v419 = vpop.trf.xlu0
          %v420 = vpop.trf.xlu0
          %v421 = vpop.trf.xlu0
          %v422 = vpop.trf.xlu0
          %v423 = vpop.trf.xlu0
          %v424 = vpop.trf.xlu0
          %v425 = vpop.trf.xlu0
          %v426 = vpop.trf.xlu0
          %v427 = vpop.trf.xlu0
          %v428 = vpop.trf.xlu0
          %v429 = vpop.trf.xlu0
          %v430 = vpop.trf.xlu0
          %vm431 = vcmask 39936
          %v433 = vsel %vm431, %v415, 0
          %v436 = vsel %vm431, %v416, 0
          %v439 = vsel %vm431, %v417, 0
          %v442 = vsel %vm431, %v418, 0
          %v445 = vsel %vm431, %v419, 0
          %v448 = vsel %vm431, %v420, 0
          %v451 = vsel %vm431, %v421, 0
          %v454 = vsel %vm431, %v422, 0
          %v457 = vsel %vm431, %v423, 0
          %v460 = vsel %vm431, %v424, 0
          %v463 = vsel %vm431, %v425, 0
          %v466 = vsel %vm431, %v426, 0
          %v469 = vsel %vm431, %v427, 0
          %v472 = vsel %vm431, %v428, 0
          %v475 = vsel %vm431, %v429, 0
          %v478 = vsel %vm431, %v430, 0
          %vm480 = vcmask 1044480
          %v482 = vsel %vm480, %v376, 0
          %484 = vmatprep.subr.mxu0 0.0
          %485 = vmatpush1.msra.mxu0 0.0
          %486 = vmatprep.subr.mxu0 0.0
          %487 = vmatpush1.msra.mxu0 0.0
          %488 = vmatprep.subr.mxu0 0.0
          %489 = vmatpush1.msra.mxu0 0.0
          %490 = vmatprep.subr.mxu0 0.0
          %491 = vmatpush1.msra.mxu0 0.0
          %492 = vmatprep.subr.mxu0 0.0
          %493 = vmatpush1.msra.mxu0 0.0
          %494 = vmatprep.subr.mxu0 0.0
          %495 = vmatpush1.msra.mxu0 0.0
          %496 = vmatprep.subr.mxu0 0.0
          %497 = vmatpush1.msra.mxu0 0.0
          %498 = vmatprep.subr.mxu0 0.0
          %499 = vmatpush1.msra.mxu0 0.0
          %500 = vmatprep.subr.mxu0 0.0
          %501 = vmatpush1.msra.mxu0 0.0
          %502 = vmatprep.subr.mxu0 0.0
          %503 = vmatpush1.msra.mxu0 0.0
          %504 = vmatprep.subr.mxu0 0.0
          %505 = vmatpush1.msra.mxu0 0.0
          %506 = vmatprep.subr.mxu0 0.0
          %507 = vmatpush1.msra.mxu0 0.0
          %508 = vmatprep.subr.mxu0 0.0
          %509 = vmatpush1.msra.mxu0 0.0
          %510 = vmatprep.subr.mxu0 0.0
          %511 = vmatpush1.msra.mxu0 0.0
          %512 = vmatprep.subr.mxu0 0.0
          %513 = vmatpush1.msra.mxu0 0.0
          %514 = vmatprep.subr.mxu0 0.0
          %515 = vmatpush1.msra.mxu0 %v482
          %516 = vmatprep.subr.mxu0 0.0
          %517 = vmatpush2.msra.mxu0 0.0
          %518 = vmatprep.subr.mxu0 0.0
          %519 = vmatpush2.msra.mxu0 0.0
          %520 = vmatprep.subr.mxu0 0.0
          %521 = vmatpush2.msra.mxu0 0.0
          %522 = vmatprep.subr.mxu0 0.0
          %523 = vmatpush2.msra.mxu0 0.0
          %524 = vmatprep.subr.mxu0 0.0
          %525 = vmatpush2.msra.mxu0 0.0
          %526 = vmatprep.subr.mxu0 0.0
          %527 = vmatpush2.msra.mxu0 0.0
          %528 = vmatprep.subr.mxu0 0.0
          %529 = vmatpush2.msra.mxu0 0.0
          %530 = vmatprep.subr.mxu0 0.0
          %531 = vmatpush2.msra.mxu0 0.0
          %532 = vmatprep.subr.mxu0 0.0
          %533 = vmatpush2.msra.mxu0 0.0
          %534 = vmatprep.subr.mxu0 0.0
          %535 = vmatpush2.msra.mxu0 0.0
          %536 = vmatprep.subr.mxu0 0.0
          %537 = vmatpush2.msra.mxu0 0.0
          %538 = vmatprep.subr.mxu0 0.0
          %539 = vmatpush2.msra.mxu0 0.0
          %540 = vmatprep.subr.mxu0 0.0
          %541 = vmatpush2.msra.mxu0 0.0
          %542 = vmatprep.subr.mxu0 0.0
          %543 = vmatpush2.msra.mxu0 0.0
          %544 = vmatprep.subr.mxu0 0.0
          %545 = vmatpush2.msra.mxu0 0.0
          %546 = vmatprep.subr.mxu0 0.0
          %547 = vmatpush2.msra.mxu0 0.0
          %548 = vmatprep.mubr.f32.mxu0 0.0
          %549 = vmatmul.mubr.f32.gmra.mxu0 %v433
          %v550 = vpop.f32.mrf.mxu0
          %v551 = vadd.f32 0.0, %v550
          %v552 = vpop.f32.mrf.mxu0
          %553 = vmatprep.mubr.f32.mxu0 0.0
          %554 = vmatmul.mubr.f32.gmra.mxu0 %v436
          %v555 = vpop.f32.mrf.mxu0
          %v556 = vadd.f32 0.0, %v555
          %v557 = vpop.f32.mrf.mxu0
          %558 = vmatprep.mubr.f32.mxu0 0.0
          %559 = vmatmul.mubr.f32.gmra.mxu0 %v439
          %v560 = vpop.f32.mrf.mxu0
          %v561 = vadd.f32 0.0, %v560
          %v562 = vpop.f32.mrf.mxu0
          %563 = vmatprep.mubr.f32.mxu0 0.0
          %564 = vmatmul.mubr.f32.gmra.mxu0 %v442
          %v565 = vpop.f32.mrf.mxu0
          %v566 = vadd.f32 0.0, %v565
          %v567 = vpop.f32.mrf.mxu0
          %568 = vmatprep.mubr.f32.mxu0 0.0
          %569 = vmatmul.mubr.f32.gmra.mxu0 %v445
          %v570 = vpop.f32.mrf.mxu0
          %v571 = vadd.f32 0.0, %v570
          %v572 = vpop.f32.mrf.mxu0
          %573 = vmatprep.mubr.f32.mxu0 0.0
          %574 = vmatmul.mubr.f32.gmra.mxu0 %v448
          %v575 = vpop.f32.mrf.mxu0
          %v576 = vadd.f32 0.0, %v575
          %v577 = vpop.f32.mrf.mxu0
          %578 = vmatprep.mubr.f32.mxu0 0.0
          %579 = vmatmul.mubr.f32.gmra.mxu0 %v451
          %v580 = vpop.f32.mrf.mxu0
          %v581 = vadd.f32 0.0, %v580
          %v582 = vpop.f32.mrf.mxu0
          %583 = vmatprep.mubr.f32.mxu0 0.0
          %584 = vmatmul.mubr.f32.gmra.mxu0 %v454
          %v585 = vpop.f32.mrf.mxu0
          %v586 = vadd.f32 0.0, %v585
          %v587 = vpop.f32.mrf.mxu0
          %588 = vmatprep.mubr.f32.mxu0 0.0
          %589 = vmatmul.mubr.f32.gmra.mxu0 %v457
          %v590 = vpop.f32.mrf.mxu0
          %v591 = vadd.f32 0.0, %v590
          %v592 = vpop.f32.mrf.mxu0
          %593 = vmatprep.mubr.f32.mxu0 0.0
          %594 = vmatmul.mubr.f32.gmra.mxu0 %v460
          %v595 = vpop.f32.mrf.mxu0
          %v596 = vadd.f32 0.0, %v595
          %v597 = vpop.f32.mrf.mxu0
          %598 = vmatprep.mubr.f32.mxu0 0.0
          %599 = vmatmul.mubr.f32.gmra.mxu0 %v463
          %v600 = vpop.f32.mrf.mxu0
          %v601 = vadd.f32 0.0, %v600
          %v602 = vpop.f32.mrf.mxu0
          %603 = vmatprep.mubr.f32.mxu0 0.0
          %604 = vmatmul.mubr.f32.gmra.mxu0 %v466
          %v605 = vpop.f32.mrf.mxu0
          %v606 = vadd.f32 0.0, %v605
          %v607 = vpop.f32.mrf.mxu0
          %608 = vmatprep.mubr.f32.mxu0 0.0
          %609 = vmatmul.mubr.f32.gmra.mxu0 %v469
          %v610 = vpop.f32.mrf.mxu0
          %v611 = vadd.f32 0.0, %v610
          %v612 = vpop.f32.mrf.mxu0
          %613 = vmatprep.mubr.f32.mxu0 0.0
          %614 = vmatmul.mubr.f32.gmra.mxu0 %v472
          %v615 = vpop.f32.mrf.mxu0
          %v616 = vadd.f32 0.0, %v615
          %v617 = vpop.f32.mrf.mxu0
          %618 = vmatprep.mubr.f32.mxu0 0.0
          %619 = vmatmul.mubr.f32.gmra.mxu0 %v475
          %v620 = vpop.f32.mrf.mxu0
          %v621 = vadd.f32 0.0, %v620
          %v622 = vpop.f32.mrf.mxu0
          %623 = vmatprep.mubr.f32.mxu0 0.0
          %624 = vmatmul.mubr.f32.gmra.mxu0 %v478
          %v625 = vpop.f32.mrf.mxu0
          %v626 = vadd.f32 0.0, %v625
          %v627 = vpop.f32.mrf.mxu0
          %628 = vdwg.mxu0
          %v629 = vmax.f32 %v551, 0.0
          %v630 = vmax.f32 %v556, 0.0
          %v631 = vmax.f32 %v561, 0.0
          %v632 = vmax.f32 %v566, 0.0
          %v633 = vmax.f32 %v571, 0.0
          %v634 = vmax.f32 %v576, 0.0
          %v635 = vmax.f32 %v581, 0.0
          %v636 = vmax.f32 %v586, 0.0
          %v637 = vmax.f32 %v591, 0.0
          %v638 = vmax.f32 %v596, 0.0
          %v639 = vmax.f32 %v601, 0.0
          %v640 = vmax.f32 %v606, 0.0
          %v641 = vmax.f32 %v611, 0.0
          %v642 = vmax.f32 %v616, 0.0
          %v643 = vmax.f32 %v621, 0.0
          %v644 = vmax.f32 %v626, 0.0
          %v645 = vmin.f32 %v629, %v633
          %v646 = vmin.f32 %v630, %v634
          %v647 = vmin.f32 %v631, %v635
          %v648 = vmin.f32 %v632, %v636
          %v649 = vmin.f32 %v645, %v637
          %v650 = vmin.f32 %v646, %v638
          %v651 = vmin.f32 %v647, %v639
          %v652 = vmin.f32 %v648, %v640
          %v653 = vmin.f32 %v649, %v641
          %v654 = vmin.f32 %v650, %v642
          %v655 = vmin.f32 %v651, %v643
          %v656 = vmin.f32 %v652, %v644
          %v657 = vmin.f32 %v653, %v654
          %v658 = vmin.f32 %v655, %v656
          %v659 = vmin.f32 %v657, %v658
          %v660 = vrot.slane %v659, 4
          %v661 = vmin.f32 %v659, %v660
          %v662 = vrot.slane %v661, 2
          %v663 = vmin.f32 %v661, %v662
          %v664 = vrot.slane %v663, 1
          %v665 = vmin.f32 %v663, %v664
          %666 = vmin.xlane.f32.xlu0 %v629
          %v667 = vpop.xlane.xlu0 %666
          %668 = vmin.xlane.f32.xlu0 %v630
          %v669 = vpop.xlane.xlu0 %668
          %670 = vmin.xlane.f32.xlu0 %v631
          %v671 = vpop.xlane.xlu0 %670
          %672 = vmin.xlane.f32.xlu0 %v632
          %v673 = vpop.xlane.xlu0 %672
          %674 = vmin.xlane.f32.xlu0 %v633
          %v675 = vpop.xlane.xlu0 %674
          %676 = vmin.xlane.f32.xlu0 %v634
          %v677 = vpop.xlane.xlu0 %676
          %678 = vmin.xlane.f32.xlu0 %v635
          %v679 = vpop.xlane.xlu0 %678
          %680 = vmin.xlane.f32.xlu0 %v636
          %v681 = vpop.xlane.xlu0 %680
          %682 = vmin.xlane.f32.xlu0 %v637
          %v683 = vpop.xlane.xlu0 %682
          %684 = vmin.xlane.f32.xlu0 %v638
          %v685 = vpop.xlane.xlu0 %684
          %686 = vmin.xlane.f32.xlu0 %v639
          %v687 = vpop.xlane.xlu0 %686
          %688 = vmin.xlane.f32.xlu0 %v640
          %v689 = vpop.xlane.xlu0 %688
          %690 = vmin.xlane.f32.xlu0 %v641
          %v691 = vpop.xlane.xlu0 %690
          %692 = vmin.xlane.f32.xlu0 %v642
          %v693 = vpop.xlane.xlu0 %692
          %694 = vmin.xlane.f32.xlu0 %v643
          %v695 = vpop.xlane.xlu0 %694
          %696 = vmin.xlane.f32.xlu0 %v644
          %v697 = vpop.xlane.xlu0 %696
          %v698 = vrsqrt.pop %v667
          %v699 = vmul.f32 %v667, %v698
          %vm700 = vcmp.eq.f32.partialorder %v667, inf
          %v701 = vsel %vm700, %v667, %v699
          %vm702 = vcmp.eq.f32.partialorder %v667, 0.0
          %v703 = vand.u32 %v667, 2147483648
          %v704 = vsel %vm702, %v703, %v701
          %v705 = vrsqrt.pop %v669
          %v706 = vmul.f32 %v669, %v705
          %vm707 = vcmp.eq.f32.partialorder %v669, inf
          %v708 = vsel %vm707, %v669, %v706
          %vm709 = vcmp.eq.f32.partialorder %v669, 0.0
          %v710 = vand.u32 %v669, 2147483648
          %v711 = vsel %vm709, %v710, %v708
          %v712 = vrsqrt.pop %v671
          %v713 = vmul.f32 %v671, %v712
          %vm714 = vcmp.eq.f32.partialorder %v671, inf
          %v715 = vsel %vm714, %v671, %v713
          %vm716 = vcmp.eq.f32.partialorder %v671, 0.0
          %v717 = vand.u32 %v671, 2147483648
          %v718 = vsel %vm716, %v717, %v715
          %v719 = vrsqrt.pop %v673
          %v720 = vmul.f32 %v673, %v719
          %vm721 = vcmp.eq.f32.partialorder %v673, inf
          %v722 = vsel %vm721, %v673, %v720
          %vm723 = vcmp.eq.f32.partialorder %v673, 0.0
          %v724 = vand.u32 %v673, 2147483648
          %v725 = vsel %vm723, %v724, %v722
          %v726 = vrsqrt.pop %v675
          %v727 = vmul.f32 %v675, %v726
          %vm728 = vcmp.eq.f32.partialorder %v675, inf
          %v729 = vsel %vm728, %v675, %v727
          %vm730 = vcmp.eq.f32.partialorder %v675, 0.0
          %v731 = vand.u32 %v675, 2147483648
          %v732 = vsel %vm730, %v731, %v729
          %v733 = vrsqrt.pop %v677
          %v734 = vmul.f32 %v677, %v733
          %vm735 = vcmp.eq.f32.partialorder %v677, inf
          %v736 = vsel %vm735, %v677, %v734
          %vm737 = vcmp.eq.f32.partialorder %v677, 0.0
          %v738 = vand.u32 %v677, 2147483648
          %v739 = vsel %vm737, %v738, %v736
          %v740 = vrsqrt.pop %v679
          %v741 = vmul.f32 %v679, %v740
          %vm742 = vcmp.eq.f32.partialorder %v679, inf
          %v743 = vsel %vm742, %v679, %v741
          %vm744 = vcmp.eq.f32.partialorder %v679, 0.0
          %v745 = vand.u32 %v679, 2147483648
          %v746 = vsel %vm744, %v745, %v743
          %v747 = vrsqrt.pop %v681
          %v748 = vmul.f32 %v681, %v747
          %vm749 = vcmp.eq.f32.partialorder %v681, inf
          %v750 = vsel %vm749, %v681, %v748
          %vm751 = vcmp.eq.f32.partialorder %v681, 0.0
          %v752 = vand.u32 %v681, 2147483648
          %v753 = vsel %vm751, %v752, %v750
          %v754 = vrsqrt.pop %v683
          %v755 = vmul.f32 %v683, %v754
          %vm756 = vcmp.eq.f32.partialorder %v683, inf
          %v757 = vsel %vm756, %v683, %v755
          %vm758 = vcmp.eq.f32.partialorder %v683, 0.0
          %v759 = vand.u32 %v683, 2147483648
          %v760 = vsel %vm758, %v759, %v757
          %v761 = vrsqrt.pop %v685
          %v762 = vmul.f32 %v685, %v761
          %vm763 = vcmp.eq.f32.partialorder %v685, inf
          %v764 = vsel %vm763, %v685, %v762
          %vm765 = vcmp.eq.f32.partialorder %v685, 0.0
          %v766 = vand.u32 %v685, 2147483648
          %v767 = vsel %vm765, %v766, %v764
          %v768 = vrsqrt.pop %v687
          %v769 = vmul.f32 %v687, %v768
          %vm770 = vcmp.eq.f32.partialorder %v687, inf
          %v771 = vsel %vm770, %v687, %v769
          %vm772 = vcmp.eq.f32.partialorder %v687, 0.0
          %v773 = vand.u32 %v687, 2147483648
          %v774 = vsel %vm772, %v773, %v771
          %v775 = vrsqrt.pop %v689
          %v776 = vmul.f32 %v689, %v775
          %vm777 = vcmp.eq.f32.partialorder %v689, inf
          %v778 = vsel %vm777, %v689, %v776
          %vm779 = vcmp.eq.f32.partialorder %v689, 0.0
          %v780 = vand.u32 %v689, 2147483648
          %v781 = vsel %vm779, %v780, %v778
          %v782 = vrsqrt.pop %v691
          %v783 = vmul.f32 %v691, %v782
          %vm784 = vcmp.eq.f32.partialorder %v691, inf
          %v785 = vsel %vm784, %v691, %v783
          %vm786 = vcmp.eq.f32.partialorder %v691, 0.0
          %v787 = vand.u32 %v691, 2147483648
          %v788 = vsel %vm786, %v787, %v785
          %v789 = vrsqrt.pop %v693
          %v790 = vmul.f32 %v693, %v789
          %vm791 = vcmp.eq.f32.partialorder %v693, inf
          %v792 = vsel %vm791, %v693, %v790
          %vm793 = vcmp.eq.f32.partialorder %v693, 0.0
          %v794 = vand.u32 %v693, 2147483648
          %v795 = vsel %vm793, %v794, %v792
          %v796 = vrsqrt.pop %v695
          %v797 = vmul.f32 %v695, %v796
          %vm798 = vcmp.eq.f32.partialorder %v695, inf
          %v799 = vsel %vm798, %v695, %v797
          %vm800 = vcmp.eq.f32.partialorder %v695, 0.0
          %v801 = vand.u32 %v695, 2147483648
          %v802 = vsel %vm800, %v801, %v799
          %v803 = vrsqrt.pop %v697
          %v804 = vmul.f32 %v697, %v803
          %vm805 = vcmp.eq.f32.partialorder %v697, inf
          %v806 = vsel %vm805, %v697, %v804
          %vm807 = vcmp.eq.f32.partialorder %v697, 0.0
          %v808 = vand.u32 %v697, 2147483648
          %v809 = vsel %vm807, %v808, %v806
          %vm810 = vcmask 7168
          %v811 = vsel %vm810, %v704, 0.0
          %v812 = vsel %vm810, %v711, 0.0
          %v813 = vadd.f32 %v811, %v812
          %v814 = vsel %vm810, %v718, 0.0
          %v815 = vadd.f32 %v813, %v814
          %v816 = vsel %vm810, %v725, 0.0
          %v817 = vadd.f32 %v815, %v816
          %v818 = vsel %vm810, %v732, 0.0
          %v819 = vadd.f32 %v817, %v818
          %v820 = vsel %vm810, %v739, 0.0
          %v821 = vadd.f32 %v819, %v820
          %v822 = vsel %vm810, %v746, 0.0
          %v823 = vadd.f32 %v821, %v822
          %v824 = vsel %vm810, %v753, 0.0
          %v825 = vadd.f32 %v823, %v824
          %v826 = vsel %vm810, %v760, 0.0
          %v827 = vadd.f32 %v825, %v826
          %v828 = vsel %vm810, %v767, 0.0
          %v829 = vadd.f32 %v827, %v828
          %v830 = vsel %vm810, %v774, 0.0
          %v831 = vadd.f32 %v829, %v830
          %v832 = vsel %vm810, %v781, 0.0
          %v833 = vadd.f32 %v831, %v832
          %v834 = vsel %vm810, %v788, 0.0
          %v835 = vadd.f32 %v833, %v834
          %v836 = vsel %vm810, %v795, 0.0
          %v837 = vadd.f32 %v835, %v836
          %v838 = vsel %vm810, %v802, 0.0
          %v839 = vadd.f32 %v837, %v838
          %v840 = vsel %vm810, %v809, 0.0
          %v841 = vadd.f32 %v839, %v840
          %842 = vadd.xlane.f32.xlu0 %v841
          %v843 = vpop.xlane.xlu0 %842
          %v844 = vrot.slane %v843, 4
          %v845 = vadd.f32 %v843, %v844
          %v846 = vrot.slane %v845, 2
          %v847 = vadd.f32 %v845, %v846
          %v848 = vrot.slane %v847, 1
          %v849 = vadd.f32 %v847, %v848
          %s850 = vtos %v849
          %s851 = sadd.f32 %s850, 0.0
          %v852 = vrsqrt.pop %v665
          %v853 = vmul.f32 %v665, %v852
          %vm854 = vcmp.eq.f32.partialorder %v665, inf
          %v855 = vsel %vm854, %v665, %v853
          %vm856 = vcmp.eq.f32.partialorder %v665, 0.0
          %v857 = vand.u32 %v665, 2147483648
          %v858 = vsel %vm856, %v857, %v855
          %v859 = vsel %vm269, %v858, 0.0
          %860 = vadd.xlane.f32.xlu0 %v859
          %v861 = vpop.xlane.xlu0 %860
          %v862 = vrot.slane %v861, 4
          %v863 = vadd.f32 %v861, %v862
          %v864 = vrot.slane %v863, 2
          %v865 = vadd.f32 %v863, %v864
          %v866 = vrot.slane %v865, 1
          %v867 = vadd.f32 %v865, %v866
          %s868 = vtos %v867
          %s869 = sadd.f32 %s868, 0.0
          %s870 = sadd.f32 %s851, %s869
          %s871 = smul.f32 %s870, 0.5
          %s872 = smul.f32 %s871, 0.0078125
          %s873 = ssub.f32 1.0, %s253
          %s874 = smul.f32 %s873, %s280
          %s875 = smul.f32 %s253, %s872
          %s876 = sadd.f32 %s874, %s875
          %v877 = vstv %s876
          %878 = vst [vmem:[%s138] sm:$0x1] %v877
        $region36: #{tpu_custom_call.1} parent=23 // pred_fallthru
          _
        %s879 = sand.u32 %s57, 1
        %s880 = scalar_lea.sflag [#allocation6], %s879
        %s881 = sand.u32 %s57, 1
        %s882 = scalar_lea.vmem [#allocation7], %s881
        // Predicated region
        $region37: #{tpu_custom_call.1} parent=23 // pred_check
          %p883 = pneg %p67
        $region38: #{tpu_custom_call.1} parent=23 // pred_check_branch
          %885 = sbr.rel (%p883) target = $region40
        $region39: #{tpu_custom_call.1} parent=23 // pred_region
          %s887 = ssub.s32 16, 16
          %888 = vsyncadd %s880, %s887
          %s889 = smul.addr %s23, 16
          %s890 = scalar_lea.hbm %s2, %s889
          %s892 = sshll.u32 %s882, 4
          %s893 = int_to_ptr.vmem [resolvable:$true] %s892
          %895 = dma.vmem_to_hbm [thread:$0]  %s893, 16, %s890, %s880
        $region40: #{tpu_custom_call.1} parent=23 // pred_fallthru
          _
      $region24: #{tpu_custom_call.1} parent=5 // pred_fallthru
        _
      %p896 = scmp.le.s32.totalorder 2, %s18
      // Predicated region
      $region41: #{tpu_custom_call.1} parent=5 // pred_check
        %p897 = pneg %p896
      $region42: #{tpu_custom_call.1} parent=5 // pred_check_branch
        %899 = sbr.rel (%p897) target = $region44
      $region43: #{tpu_custom_call.1} parent=5 // pred_region
        %s900 = ssub.s32 %s18, 2
        // Predicated region
        $region45: #{tpu_custom_call.1} parent=43 // pred_check
          %p901 = pneg %p73
        $region46: #{tpu_custom_call.1} parent=43 // pred_check_branch
          %903 = sbr.rel (%p901) target = $region48
        $region47: #{tpu_custom_call.1} parent=43 // pred_region
          %s904 = sand.u32 %s58, 1
          %s905 = scalar_lea.sflag [#allocation6], %s904
          %s906 = sand.u32 %s58, 1
          %s907 = scalar_lea.vmem [#allocation7], %s906
          %908 = dma.done %s905, 16
        $region48: #{tpu_custom_call.1} parent=43 // pred_fallthru
          _
      $region44: #{tpu_custom_call.1} parent=5 // pred_fallthru
        _
    $region6: #{tpu_custom_call.1} parent=1 // loop_footer
      %s22 = sadd.s32 1, %s18
    $region7: #{tpu_custom_call.1} parent=1 // loop_footer_branch
      %17 = sbr.rel target = $region3
    $region8: #{tpu_custom_call.1} parent=1 // loop_exit
      _
    %909 = vsyncpa [#allocation5], 1
    %s910 = scalar_lea.sflag [#allocation5], 1
    %911 = vsyncpa %s910, 1
    %912 = vsyncpa [#allocation6], 1
    %s913 = scalar_lea.sflag [#allocation6], 1
    %914 = vsyncpa %s913, 1

</llo_original>
